<compile_context>
chip_gen: v5e
topology: v5e:2x2
jax: 0.10.0
libtpu: 0.0.40
codegen_flags: <defaults>
</compile_context>

<pallas_src>
import jax
import jax.numpy as jnp
from jax.experimental import pallas as pl
from jax.experimental.pallas import tpu as pltpu

N_INPUTS = 5             # len(env.reset())
N_HIDDEN = 64
N_OUTPUTS = 3            # env.action_space.n (Discrete(3))
N_FEAT = N_INPUTS - 3    # = 2  -> state[:, 2:4]
_NEG_BIG = -1e30         # bias fill for padded layer-2 lanes (exp -> exactly 0)
_MAX_TB = 4096           # max batch tile (review: 512 was per-step-overhead bound)
_SPLIT_THRESHOLD = 1024  # below this, one exact block; above, >=2 grid steps


def _round_up(x, m):
    return ((x + m - 1) // m) * m


def _policy_kernel(s_ref, w1_ref, b1_ref, w2_ref, b2_ref, out_ref):
    # s:  (TB, 5)  f32   raw state tile, sliced in-kernel
    # w1: (2, 64)  f32   layer-1 weight, (in, out) layout
    # b1: (1, 64)  f32
    # w2: (64, 64) bf16  layer-2 weight lane-padded: cols 0..2 real, rest 0
    # b2: (1, 64)  f32   cols 0..2 real, rest -1e30
    # out:(TB,128) bf16  lanes 0..63 = z, lanes 64..66 = probs, rest 0

    # state columns 2 (state_var) and 3 (state_mean)
    x0 = s_ref[:, 2:3]                                   # (TB, 1)
    x1 = s_ref[:, 3:4]                                   # (TB, 1)

    # ---- layer 1 (K = 2): two VPU broadcast-FMAs (f32, v5e-safe) ----
    h = x0 * w1_ref[0:1, :] + x1 * w1_ref[1:2, :] + b1_ref[...]
    z = jnp.maximum(h, 0.0)                              # (TB, 64) f32
    z_bf = z.astype(jnp.bfloat16)                        # MXU operand + store value

    # ---- layer 2 (K = 64): bf16 MXU matmul, f32 accumulation ----
    logits = jnp.dot(z_bf, w2_ref[...],
                     preferred_element_type=jnp.float32) + b2_ref[...]  # (TB,64) f32

    # ---- softmax over the 3 valid lanes (single exp, exact reciprocal) ----
    l0 = logits[:, 0:1]
    l1 = logits[:, 1:2]
    l2 = logits[:, 2:3]
    m = jnp.maximum(jnp.maximum(l0, l1), l2)             # (TB, 1)
    p_un = jnp.exp(logits - m)                           # (TB, 64); pad lanes -> 0 exactly
    denom = p_un[:, 0:1] + p_un[:, 1:2] + p_un[:, 2:3]   # (TB, 1)
    inv = 1.0 / denom                                    # exact (probs sum to 1)
    probs = p_un * inv                                   # (TB, 64) f32

    # single lane-dense, unmasked 128-lane bf16 store: [z | probs(padded)]
    # (fallback if concat ever materializes a VMEM temp: two direct sub-stores
    #  out_ref[:, :64] / out_ref[:, 64:])
    out_ref[...] = jnp.concatenate(
        [z_bf, probs.astype(jnp.bfloat16)], axis=-1)     # (TB, 128) bf16


def prepare_params(w1, b1, w2, b2):
    """One-time conversion of PyTorch-layout params (out,in) into the
    kernel-resident layout.  Do this at init, NOT on the per-call path."""
    w1_t = jnp.asarray(w1, jnp.float32).T                        # (2, 64) f32
    b1_2d = jnp.asarray(b1, jnp.float32).reshape(1, N_HIDDEN)    # (1, 64) f32
    w2_t = jnp.asarray(w2, jnp.float32).T                        # (64, 3)
    w2_p = jnp.zeros((N_HIDDEN, N_HIDDEN), jnp.float32)
    w2_p = w2_p.at[:, :N_OUTPUTS].set(w2_t).astype(jnp.bfloat16)  # (64, 64) bf16
    b2_p = jnp.full((1, N_HIDDEN), _NEG_BIG, jnp.float32)
    b2_p = b2_p.at[0, :N_OUTPUTS].set(jnp.asarray(b2, jnp.float32))  # (1, 64) f32
    return w1_t, b1_2d, w2_p, b2_p


def _choose_tile(B, max_tb, split_threshold):
    """Batch tile: exact single block for small B (valid for any B, even
    non-multiple-of-8); for large B, >=2 grid steps (v7x: both TCs),
    tile a multiple of 16 (bf16 sublane packing) capped at max_tb."""
    if B <= split_threshold:
        return B
    return min(max_tb, _round_up(pl.cdiv(B, 2), 16))


def policy_estimator_forward_packed(state, params, *,
                                    max_tb=_MAX_TB,
                                    split_threshold=_SPLIT_THRESHOLD):
    """state: (B, 5) float32.  Returns the packed (B, 128) bf16 slab:
    lanes 0..63 = z (hidden), lanes 64..66 = action_probs, rest zero."""
    w1_t, b1_2d, w2_p, b2_p = params
    if state.dtype != jnp.float32:
        state = state.astype(jnp.float32)
    B = state.shape[0]

    TB = _choose_tile(B, max_tb, split_threshold)
    grid = (pl.cdiv(B, TB),)   # partial last block: rows past B are discarded

    return pl.pallas_call(
        _policy_kernel,
        out_shape=jax.ShapeDtypeStruct((B, 2 * N_HIDDEN), jnp.bfloat16),
        grid_spec=pltpu.PrefetchScalarGridSpec(
            num_scalar_prefetch=0,
            grid=grid,
            in_specs=[
                pl.BlockSpec((TB, N_INPUTS), lambda i: (i, 0)),       # state
                pl.BlockSpec((N_FEAT, N_HIDDEN), lambda i: (0, 0)),   # w1
                pl.BlockSpec((1, N_HIDDEN), lambda i: (0, 0)),        # b1
                pl.BlockSpec((N_HIDDEN, N_HIDDEN), lambda i: (0, 0)), # w2 (bf16, padded)
                pl.BlockSpec((1, N_HIDDEN), lambda i: (0, 0)),        # b2 (padded)
            ],
            out_specs=pl.BlockSpec((TB, 2 * N_HIDDEN), lambda i: (i, 0)),
        ),
        compiler_params=pltpu.CompilerParams(
            dimension_semantics=("parallel",)),
    )(state, w1_t, b1_2d, w2_p, b2_p)


def policy_estimator_forward(state, params):
    """Module-equivalent forward: returns (z, action_probs) as float32.
    Cheap consumer-side views/casts of the lane-dense packed bf16 slab."""
    packed = policy_estimator_forward_packed(state, params)
    z = packed[:, :N_HIDDEN].astype(jnp.float32)
    probs = packed[:, N_HIDDEN:N_HIDDEN + N_OUTPUTS].astype(jnp.float32)
    return z, probs


def _init_params(key):
    """Deterministic parameter init mimicking nn.Linear (PyTorch (out,in) layout)."""
    k1, k2, k3, k4 = jax.random.split(key, 4)
    lim1 = 1.0 / jnp.sqrt(N_FEAT)
    lim2 = 1.0 / jnp.sqrt(N_HIDDEN)
    w1 = jax.random.uniform(k1, (N_HIDDEN, N_FEAT), jnp.float32, -lim1, lim1)
    b1 = jax.random.uniform(k2, (N_HIDDEN,), jnp.float32, -lim1, lim1)
    w2 = jax.random.uniform(k3, (N_OUTPUTS, N_HIDDEN), jnp.float32, -lim2, lim2)
    b2 = jax.random.uniform(k4, (N_OUTPUTS,), jnp.float32, -lim2, lim2)
    return w1, b1, w2, b2


def _reference(state, w1, b1, w2, b2):
    x = state[:, 2:4]
    z_ref = jnp.maximum(x @ w1.T + b1, 0.0)
    p_ref = jax.nn.softmax(z_ref @ w2.T + b2, axis=-1)
    return z_ref, p_ref


def _check(z, probs, z_ref, p_ref, B):
    # bf16 output + bf16 MXU operands -> relaxed tolerances
    assert z.shape == (B, N_HIDDEN) and probs.shape == (B, N_OUTPUTS)
    assert jnp.allclose(z, z_ref, atol=2e-2, rtol=2e-2), "hidden mismatch"
    assert jnp.allclose(probs, p_ref, atol=2e-2, rtol=2e-2), "probs mismatch"
    assert jnp.allclose(jnp.sum(probs, axis=-1), 1.0, atol=1e-2), "probs not normalized"


if __name__ == "__main__":
    key = jax.random.PRNGKey(0)
    k_params, k_state = jax.random.split(key)

    w1, b1, w2, b2 = _init_params(k_params)
    params = prepare_params(w1, b1, w2, b2)   # one-time layout conversion

    # --- main small-shape test (B = 8, single block) ---
    B = 8
    # state rows look like (e, x, state_var, state_mean, t/100)
    state = jax.random.normal(k_state, (B, N_INPUTS), jnp.float32)
    fwd = jax.jit(policy_estimator_forward)
    z, probs = fwd(state, params)
    jax.block_until_ready((z, probs))
    _check(z, probs, *_reference(state, w1, b1, w2, b2), B)

    # --- regression: non-multiple-of-8 batch, single exact block ---
    B2 = 5
    state2 = state[:B2]
    z2, p2 = policy_estimator_forward(state2, params)
    jax.block_until_ready((z2, p2))
    _check(z2, p2, *_reference(state2, w1, b1, w2, b2), B2)

    # --- regression: multi-block path with a partial last block ---
    B3 = 40
    state3 = jax.random.normal(jax.random.PRNGKey(1), (B3, N_INPUTS), jnp.float32)
    packed3 = policy_estimator_forward_packed(state3, params,
                                              max_tb=16, split_threshold=16)
    jax.block_until_ready(packed3)
    z3 = packed3[:, :N_HIDDEN].astype(jnp.float32)
    p3 = packed3[:, N_HIDDEN:N_HIDDEN + N_OUTPUTS].astype(jnp.float32)
    _check(z3, p3, *_reference(state3, w1, b1, w2, b2), B3)

    print("KERNEL_OK")
</pallas_src>

<mosaic_0001>
module attributes {stable_mosaic.version = 11 : i64} {
  func.func @_policy_kernel(%arg0: i32, %arg1: memref<8x5xf32, #tpu.memory_space<vmem>>, %arg2: memref<2x64xf32, #tpu.memory_space<vmem>>, %arg3: memref<1x64xf32, #tpu.memory_space<vmem>>, %arg4: memref<64x64xbf16, #tpu.memory_space<vmem>>, %arg5: memref<1x64xf32, #tpu.memory_space<vmem>>, %arg6: memref<8x128xbf16, #tpu.memory_space<vmem>>) attributes {dimension_semantics = [#tpu.dimension_semantics<parallel>], iteration_bounds = array<i64: 1>, scalar_prefetch = 0 : i64, scratch_operands = 0 : i64, tpu.core_type = #tpu.core_type<tc>, window_params = [{transform_indices = @transform_0, window_bounds = array<i64: 8, 5>}, {pipeline_mode = #tpu.pipeline_mode<synchronous>, transform_indices = @transform_1, window_bounds = array<i64: 2, 64>}, {pipeline_mode = #tpu.pipeline_mode<synchronous>, transform_indices = @transform_2, window_bounds = array<i64: 1, 64>}, {pipeline_mode = #tpu.pipeline_mode<synchronous>, transform_indices = @transform_3, window_bounds = array<i64: 64, 64>}, {pipeline_mode = #tpu.pipeline_mode<synchronous>, transform_indices = @transform_4, window_bounds = array<i64: 1, 64>}, {transform_indices = @transform_5, window_bounds = array<i64: 8, 128>}]} {
    %c0 = arith.constant 0 : index
    %c2 = arith.constant 2 : index
    %0 = vector.load %arg1[%c0, %c2] : memref<8x5xf32, #tpu.memory_space<vmem>>, vector<8x1xf32>
    %c0_0 = arith.constant 0 : index
    %c3 = arith.constant 3 : index
    %1 = vector.load %arg1[%c0_0, %c3] : memref<8x5xf32, #tpu.memory_space<vmem>>, vector<8x1xf32>
    %c0_1 = arith.constant 0 : index
    %c0_2 = arith.constant 0 : index
    %2 = vector.load %arg2[%c0_1, %c0_2] : memref<2x64xf32, #tpu.memory_space<vmem>>, vector<1x64xf32>
    %3 = vector.broadcast %0 : vector<8x1xf32> to vector<8x64xf32>
    %4 = vector.broadcast %2 : vector<1x64xf32> to vector<8x64xf32>
    %5 = arith.mulf %3, %4 : vector<8x64xf32>
    %c1 = arith.constant 1 : index
    %c0_3 = arith.constant 0 : index
    %6 = vector.load %arg2[%c1, %c0_3] : memref<2x64xf32, #tpu.memory_space<vmem>>, vector<1x64xf32>
    %7 = vector.broadcast %1 : vector<8x1xf32> to vector<8x64xf32>
    %8 = vector.broadcast %6 : vector<1x64xf32> to vector<8x64xf32>
    %9 = arith.mulf %7, %8 : vector<8x64xf32>
    %10 = arith.addf %5, %9 : vector<8x64xf32>
    %c0_4 = arith.constant 0 : index
    %c0_5 = arith.constant 0 : index
    %11 = vector.load %arg3[%c0_4, %c0_5] : memref<1x64xf32, #tpu.memory_space<vmem>>, vector<1x64xf32>
    %12 = vector.broadcast %11 : vector<1x64xf32> to vector<8x64xf32>
    %13 = arith.addf %10, %12 : vector<8x64xf32>
    %cst = arith.constant 0.000000e+00 : f32
    %14 = vector.broadcast %cst : f32 to vector<8x64xf32>
    %15 = arith.maximumf %13, %14 : vector<8x64xf32>
    %16 = arith.truncf %15 : vector<8x64xf32> to vector<8x64xbf16>
    %c0_6 = arith.constant 0 : index
    %c0_7 = arith.constant 0 : index
    %17 = vector.load %arg4[%c0_6, %c0_7] : memref<64x64xbf16, #tpu.memory_space<vmem>>, vector<64x64xbf16>
    %cst_8 = arith.constant dense<0.000000e+00> : vector<8x64xf32>
    %18 = tpu.matmul %16, %17, %cst_8 {dimension_numbers = #tpu.dot_dimension_numbers<[1], [0], [0], [1], [0, 0, 1, 1], [], []>} : vector<8x64xbf16>, vector<64x64xbf16>, vector<8x64xf32> -> vector<8x64xf32>
    %c0_9 = arith.constant 0 : index
    %c0_10 = arith.constant 0 : index
    %19 = vector.load %arg5[%c0_9, %c0_10] : memref<1x64xf32, #tpu.memory_space<vmem>>, vector<1x64xf32>
    %20 = vector.broadcast %19 : vector<1x64xf32> to vector<8x64xf32>
    %21 = arith.addf %18, %20 : vector<8x64xf32>
    %22 = vector.extract_strided_slice %21 {offsets = [0, 0], sizes = [8, 1], strides = [1, 1]} : vector<8x64xf32> to vector<8x1xf32>
    %23 = vector.extract_strided_slice %21 {offsets = [0, 1], sizes = [8, 1], strides = [1, 1]} : vector<8x64xf32> to vector<8x1xf32>
    %24 = vector.extract_strided_slice %21 {offsets = [0, 2], sizes = [8, 1], strides = [1, 1]} : vector<8x64xf32> to vector<8x1xf32>
    %25 = arith.maximumf %22, %23 : vector<8x1xf32>
    %26 = arith.maximumf %25, %24 : vector<8x1xf32>
    %27 = vector.broadcast %26 : vector<8x1xf32> to vector<8x64xf32>
    %28 = arith.subf %21, %27 : vector<8x64xf32>
    %29 = math.exp %28 : vector<8x64xf32>
    %30 = vector.extract_strided_slice %29 {offsets = [0, 0], sizes = [8, 1], strides = [1, 1]} : vector<8x64xf32> to vector<8x1xf32>
    %31 = vector.extract_strided_slice %29 {offsets = [0, 1], sizes = [8, 1], strides = [1, 1]} : vector<8x64xf32> to vector<8x1xf32>
    %32 = arith.addf %30, %31 : vector<8x1xf32>
    %33 = vector.extract_strided_slice %29 {offsets = [0, 2], sizes = [8, 1], strides = [1, 1]} : vector<8x64xf32> to vector<8x1xf32>
    %34 = arith.addf %32, %33 : vector<8x1xf32>
    %cst_11 = arith.constant 1.000000e+00 : f32
    %35 = vector.broadcast %cst_11 : f32 to vector<8x1xf32>
    %36 = arith.divf %35, %34 : vector<8x1xf32>
    %37 = vector.broadcast %36 : vector<8x1xf32> to vector<8x64xf32>
    %38 = arith.mulf %29, %37 : vector<8x64xf32>
    %39 = arith.truncf %38 : vector<8x64xf32> to vector<8x64xbf16>
    %40 = tpu.concatenate %16, %39 in 1 : vector<8x64xbf16>, vector<8x64xbf16> -> vector<8x128xbf16>
    %c0_12 = arith.constant 0 : index
    %c0_13 = arith.constant 0 : index
    %41 = vector.load %arg6[%c0_12, %c0_13] : memref<8x128xbf16, #tpu.memory_space<vmem>>, vector<8x128xbf16>
    tpu.vector_store %arg6[%c0_12, %c0_13], %40 {strides = array<i32>} : memref<8x128xbf16, #tpu.memory_space<vmem>>, vector<8x128xbf16>,
    return
  }
  func.func @transform_0(%arg0: i32) -> (i32, i32) {
    %c0_i32 = arith.constant 0 : i32
    %c0_i32_0 = arith.constant 0 : i32
    return %arg0, %c0_i32 : i32, i32
  }
  func.func @transform_1(%arg0: i32) -> (i32, i32) {
    %c0_i32 = arith.constant 0 : i32
    %c0_i32_0 = arith.constant 0 : i32
    %c0_i32_1 = arith.constant 0 : i32
    return %c0_i32, %c0_i32_0 : i32, i32
  }
  func.func @transform_2(%arg0: i32) -> (i32, i32) {
    %c0_i32 = arith.constant 0 : i32
    %c0_i32_0 = arith.constant 0 : i32
    %c0_i32_1 = arith.constant 0 : i32
    return %c0_i32, %c0_i32_0 : i32, i32
  }
  func.func @transform_3(%arg0: i32) -> (i32, i32) {
    %c0_i32 = arith.constant 0 : i32
    %c0_i32_0 = arith.constant 0 : i32
    %c0_i32_1 = arith.constant 0 : i32
    return %c0_i32, %c0_i32_0 : i32, i32
  }
  func.func @transform_4(%arg0: i32) -> (i32, i32) {
    %c0_i32 = arith.constant 0 : i32
    %c0_i32_0 = arith.constant 0 : i32
    %c0_i32_1 = arith.constant 0 : i32
    return %c0_i32, %c0_i32_0 : i32, i32
  }
  func.func @transform_5(%arg0: i32) -> (i32, i32) {
    %c0_i32 = arith.constant 0 : i32
    %c0_i32_0 = arith.constant 0 : i32
    return %arg0, %c0_i32 : i32, i32
  }
}

</mosaic_0001>

<llo_original>
// kernel: policy_estimator_forward.1
$region0: #{policy_estimator_forward.1}
  #allocation0 [shape = 'u32[]', space=smem, size = 0x4, offset = 0x4, fixed_abs, tag = 'smem constant byte address 0x4 - core index']
  #allocation1 [shape = 'u32[72,128]{1,0:T(1,128)}', space=vmem, size = 0x9000, scoped, tag = 'internal scratch']
  %s0 = inlined_call_operand.hbm [shape: f32[8,5], index: 0, kind: input, shape index: {}]
  %s1 = inlined_call_operand.hbm [shape: f32[2,64], index: 1, kind: input, shape index: {}]
  %s2 = inlined_call_operand.vmem [shape: f32[1,64], index: 2, kind: input, shape index: {}]
  %s3 = inlined_call_operand.hbm [shape: bf16[64,64], index: 3, kind: input, shape index: {}]
  %s4 = inlined_call_operand.vmem [shape: f32[1,64], index: 4, kind: input, shape index: {}]
  %s5 = inlined_call_operand.vmem [shape: bf16[8,128], index: 5, kind: output, shape index: {}]
  %s6 = sld [smem:[#allocation0]]
  $region42: #{policy_estimator_forward.1} parent=0
    _
  %s8 = ssub.s32 1, %s6
  %s9 = scalar_select 0, %s8, %s6
  $region1: #{policy_estimator_forward.1} parent=0
    #allocation2 [shape = 'u8[4096]{0}', space=vmem, size = 0x1000, scoped, tag = 'input window, operand 0, single buffered']
    #allocation3 [shape = 's32[1]{0}', space=sflag, size = 0x4, scoped, tag = 'scoped memory for policy_estimator_forward.1']
    #allocation4 [shape = 'u8[1024]{0}', space=vmem, size = 0x400, scoped, tag = 'input window, operand 1, single buffered']
    #allocation5 [shape = 's32[1]{0}', space=sflag, size = 0x4, scoped, tag = 'scoped memory for policy_estimator_forward.1']
    #allocation6 [shape = 'u8[16384]{0}', space=vmem, size = 0x4000, scoped, tag = 'input window, operand 3, single buffered']
    %10 = vsyncpa [#allocation3], 0
    %11 = vsyncpa [#allocation5], 0
    // Predicated region
    $region2: #{policy_estimator_forward.1} parent=1 // pred_check
      _
    $region3: #{policy_estimator_forward.1} parent=1 // pred_check_branch
      %13 = sbr.rel (0) target = $region5
    $region4: #{policy_estimator_forward.1} parent=1 // pred_region
      %15 = vsyncadd [#allocation3], 0
      %s17 = sshll.u32 %s0, 4
      %s18 = int_to_ptr.hbm [resolvable:$true] %s17
      %s19 = sshll.u32 [#allocation2], 4
      %s20 = int_to_ptr.vmem [resolvable:$true] %s19
      %22 = dma.hbm_to_vmem [thread:$0]  %s18, 128, %s20, [#allocation3]
    $region5: #{policy_estimator_forward.1} parent=1 // pred_fallthru
      _
    // Predicated region
    $region6: #{policy_estimator_forward.1} parent=1 // pred_check
      _
    $region7: #{policy_estimator_forward.1} parent=1 // pred_check_branch
      %24 = sbr.rel (0) target = $region9
    $region8: #{policy_estimator_forward.1} parent=1 // pred_region
      %26 = vsyncadd [#allocation5], 0
      %s28 = sshll.u32 %s1, 4
      %s29 = int_to_ptr.hbm [resolvable:$true] %s28
      %s30 = sshll.u32 [#allocation4], 4
      %s31 = int_to_ptr.vmem [resolvable:$true] %s30
      %33 = dma.hbm_to_vmem [thread:$0]  %s29, 32, %s31, [#allocation5]
    $region9: #{policy_estimator_forward.1} parent=1 // pred_fallthru
      _
    // Predicated region
    $region10: #{policy_estimator_forward.1} parent=1 // pred_check
      _
    $region11: #{policy_estimator_forward.1} parent=1 // pred_check_branch
      %35 = sbr.rel (0) target = $region13
    $region12: #{policy_estimator_forward.1} parent=1 // pred_region
      _
    $region13: #{policy_estimator_forward.1} parent=1 // pred_fallthru
      _
    // Predicated region
    $region14: #{policy_estimator_forward.1} parent=1 // pred_check
      _
    $region15: #{policy_estimator_forward.1} parent=1 // pred_check_branch
      %37 = sbr.rel (0) target = $region17
    $region16: #{policy_estimator_forward.1} parent=1 // pred_region
      %39 = vsyncadd [#allocation5], 0
      %s40 = sshll.u32 %s3, 4
      %s41 = int_to_ptr.hbm [resolvable:$true] %s40
      %s42 = sshll.u32 [#allocation6], 4
      %s43 = int_to_ptr.vmem [resolvable:$true] %s42
      %48 = dma.hbm_to_vmem [thread:$0]  %s41, 512, %s43, [#allocation5], 64, 64, 4
    $region17: #{policy_estimator_forward.1} parent=1 // pred_fallthru
      _
    // Predicated region
    $region18: #{policy_estimator_forward.1} parent=1 // pred_check
      _
    $region19: #{policy_estimator_forward.1} parent=1 // pred_check_branch
      %50 = sbr.rel (0) target = $region21
    $region20: #{policy_estimator_forward.1} parent=1 // pred_region
      _
    $region21: #{policy_estimator_forward.1} parent=1 // pred_fallthru
      _
    // Predicated region
    $region22: #{policy_estimator_forward.1} parent=1 // pred_check
      _
    $region23: #{policy_estimator_forward.1} parent=1 // pred_check_branch
      %52 = sbr.rel (0) target = $region25
    $region24: #{policy_estimator_forward.1} parent=1 // pred_region
      %54 = dma.done [#allocation3], 128
    $region25: #{policy_estimator_forward.1} parent=1 // pred_fallthru
      _
    // Predicated region
    $region26: #{policy_estimator_forward.1} parent=1 // pred_check
      _
    $region27: #{policy_estimator_forward.1} parent=1 // pred_check_branch
      %56 = sbr.rel (0) target = $region29
    $region28: #{policy_estimator_forward.1} parent=1 // pred_region
      %58 = dma.done [#allocation5], 32
    $region29: #{policy_estimator_forward.1} parent=1 // pred_fallthru
      _
    // Predicated region
    $region30: #{policy_estimator_forward.1} parent=1 // pred_check
      _
    $region31: #{policy_estimator_forward.1} parent=1 // pred_check_branch
      %60 = sbr.rel (0) target = $region33
    $region32: #{policy_estimator_forward.1} parent=1 // pred_region
      %62 = dma.done [#allocation5], 512
    $region33: #{policy_estimator_forward.1} parent=1 // pred_fallthru
      _
    %v64 = vld [vmem:[#allocation2] sm:$0xff]
    %v65 = vld [vmem:[#allocation4] sm:$0x1]
    %67 = vset.pattern.permute.xlu0 2
    %68 = vperm.xlu0 %67, %v64
    %v69 = vpop.permute.xlu0 %68
    %v71 = vperm.slane %v65, 0
    %v72 = vmul.f32 %v69, %v71
    %v73 = vld [vmem:[#allocation4 + $0x1] sm:$0x1]
    %74 = vset.pattern.permute.xlu0 3
    %75 = vperm.xlu0 %74, %v64
    %v76 = vpop.permute.xlu0 %75
    %v78 = vperm.slane %v73, 0
    %v79 = vmul.f32 %v76, %v78
    %v80 = vadd.f32 %v72, %v79
    %v81 = vld [vmem:[%s2] sm:$0x1]
    %v83 = vperm.slane %v81, 0
    %v85 = vadd.f32 %v80, %v83
    %v86 = vmax.f32 %v85, 0.0
    %v87 = vpack.c.bf16 %v86, %v86
    %v88 = vld [vmem:[#allocation6] sm:$0xf]
    %v89 = vld [vmem:[#allocation6 + $0x4] sm:$0xf]
    %v90 = vld [vmem:[#allocation6 + $0x8] sm:$0xf]
    %v91 = vld [vmem:[#allocation6 + $0xc] sm:$0xf]
    %v92 = vld [vmem:[#allocation6 + $0x10] sm:$0xf]
    %v93 = vld [vmem:[#allocation6 + $0x14] sm:$0xf]
    %v94 = vld [vmem:[#allocation6 + $0x18] sm:$0xf]
    %v95 = vld [vmem:[#allocation6 + $0x1c] sm:$0xf]
    %v96 = vld [vmem:[%s4] sm:$0x1]
    %v98 = vperm.slane %v96, 0
    %v108 = vunpack.c.l.b16 %v88
    %v109 = vunpack.c.l.b16 %v89
    %v110 = vunpack.c.l.b16 %v90
    %v111 = vunpack.c.l.b16 %v91
    %v112 = vunpack.c.l.b16 %v92
    %v113 = vunpack.c.l.b16 %v93
    %v114 = vunpack.c.l.b16 %v94
    %v115 = vunpack.c.l.b16 %v95
    %v116 = vpack.c.b16 %v109, %v108
    %v117 = vpack.c.b16 %v111, %v110
    %v118 = vpack.c.b16 %v113, %v112
    %v119 = vpack.c.b16 %v115, %v114
    %vm124 = vcmask 523264
    %v126 = vsel %vm124, %v87, 0
    %128 = vmatpush.bf16.msra.mxu0 0
    %129 = vmatpush.bf16.msra.mxu0 0
    %130 = vmatpush.bf16.msra.mxu0 0
    %131 = vmatpush.bf16.msra.mxu0 0
    %132 = vmatpush.bf16.msra.mxu0 %v119
    %133 = vmatpush.bf16.msra.mxu0 %v118
    %134 = vmatpush.bf16.msra.mxu0 %v117
    %135 = vmatpush.bf16.msra.mxu0 %v116
    %136 = vmatmul.bf16.gmra.mxu0 %v126
    %v137 = vpop.f32.mrf.mxu0
    %v138 = vadd.f32 %v98, %v137
    %v139 = vpop.f32.mrf.mxu0
    %140 = vdwg.mxu0
    %142 = vrot.lane.b32.xlu0 %v138, 127
    %v143 = vpop.permute.xlu0 %142
    %v145 = vmax.f32 %v138, %v143
    %146 = vrot.lane.b32.xlu0 %v138, 126
    %v147 = vpop.permute.xlu0 %146
    %v149 = vmax.f32 %v145, %v147
    %151 = vset.pattern.permute.xlu0 0
    %152 = vperm.xlu0 %151, %v149
    %v153 = vpop.permute.xlu0 %152
    %v155 = vsub.f32 %v138, %v153
    %v156 = vmul.f32 %v155, 1.442695
    %v157 = vpow.pop %v156
    %159 = vrot.lane.b32.xlu0 %v157, 127
    %v160 = vpop.permute.xlu0 %159
    %v162 = vadd.f32 %v157, %v160
    %163 = vrot.lane.b32.xlu0 %v157, 126
    %v164 = vpop.permute.xlu0 %163
    %v166 = vadd.f32 %v162, %v164
    %v167 = vrcp.pop %v166
    %v168 = vmul.f32 %v166, %v167
    %v169 = vsub.f32 1.0, %v168
    %v170 = vmul.f32 %v167, %v169
    %v171 = vadd.f32 %v167, %v170
    %vm172 = vweird.f32 %v166
    %vm173 = vweird.f32 %v167
    %vm174 = vmor %vm172, %vm173
    %v175 = vsel %vm174, %v167, %v171
    %v176 = vand.u32 2147483647, %v166
    %vm177 = vcmp.eq.f32.partialorder %v176, 8.507059e+37
    %v178 = vand.u32 %v166, 2147483648
    %v179 = vor.u32 1.1754944e-38, %v178
    %v180 = vsel %vm177, %v179, %v175
    %v181 = vmul.f32 1.0, %v180
    %183 = vset.pattern.permute.xlu0 0
    %184 = vperm.xlu0 %183, %v181
    %v185 = vpop.permute.xlu0 %184
    %v187 = vmul.f32 %v157, %v185
    %v188 = vpack.c.bf16 %v187, %v187
    %v190 = vunpack.c.l.b16 %v188
    %v191 = vpack.c.b16 %v190, %v190
    %192 = vrot.lane.b32.xlu0 %v191, 64
    %v193 = vpop.permute.xlu0 %192
    %v195 = vsel %vm124, %v87, %v193
    %197 = vst [vmem:[%s5] sm:$0xf] %v195
    // Predicated region
    $region34: #{policy_estimator_forward.1} parent=1 // pred_check
      _
    $region35: #{policy_estimator_forward.1} parent=1 // pred_check_branch
      %199 = sbr.rel (0) target = $region37
    $region36: #{policy_estimator_forward.1} parent=1 // pred_region
      _
    $region37: #{policy_estimator_forward.1} parent=1 // pred_fallthru
      _
    // Predicated region
    $region38: #{policy_estimator_forward.1} parent=1 // pred_check
      _
    $region39: #{policy_estimator_forward.1} parent=1 // pred_check_branch
      %201 = sbr.rel (0) target = $region41
    $region40: #{policy_estimator_forward.1} parent=1 // pred_region
      _
    $region41: #{policy_estimator_forward.1} parent=1 // pred_fallthru
      _
    %202 = vsyncpa [#allocation3], 1
    %203 = vsyncpa [#allocation5], 1

</llo_original>
